<compile_context>
chip_gen: v7x
topology: tpu7x:2x2x1
jax: 0.10.0
libtpu: 0.0.40
codegen_flags: <defaults>
</compile_context>

<pallas_src>
import functools
import math

import jax
import jax.numpy as jnp
from jax import lax
from jax.experimental import pallas as pl
from jax.experimental.pallas import tpu as pltpu


def _model_kernel(x_ref, w_ref, b_ref, out_ref, *, length):
    # y[c, b] = sum_l w[c, l] * x[b, l]  ->  lane-dense (3, TB) result.
    y = lax.dot_general(
        w_ref[...],                      # (3, L)   torch nn.Linear weight layout
        x_ref[...],                      # (TB, L)  batch tile
        dimension_numbers=(((1,), (1,)), ((), ())),
        preferred_element_type=jnp.float32,
    )
    # Bias folded as scalar adds into each row's epilogue (b_ref lives in SMEM).
    out_ref[0:1, :] = jax.nn.sigmoid(y[0:1, :] + b_ref[0]) * jnp.float32(length)
    out_ref[1:2, :] = jnp.exp(y[1:2, :] + b_ref[1])
    out_ref[2:3, :] = y[2:3, :] + b_ref[2]


def _round_up(n, m):
    return ((n + m - 1) // m) * m


def model_forward(x, w, b, length, *, tb=16384, force_pallas=False):
    """x: (B, L) f32, w: (3, L) f32 (torch layout), b: (3,) f32, length static.

    Returns ((mean, std), value) -- the Normal distribution is returned as its
    parameters, matching torch.distributions.Normal(mean, std).
    """
    B, L = x.shape

    if not force_pallas and B < 4096:
        # Tiny batch: pallas_call dispatch overhead dominates; let XLA fuse it.
        y = x @ w.T + b
        return (jax.nn.sigmoid(y[:, 0]) * length, jnp.exp(y[:, 1])), y[:, 2]

    # Lane-dense batch tiling: tb a multiple of 128 (lane width), clamped to B.
    tb = max(128, min(_round_up(tb, 128), _round_up(B, 128)))
    grid = (pl.cdiv(B, tb),)  # partial tail block handled by Pallas clipping

    # Per-buffer VMEM footprint (x tile lane-padded 32 -> 128; output sublane-
    # padded 3 -> 8); give the compiler comfortable headroom on every gen.
    x_block_bytes = tb * 128 * 4
    out_block_bytes = 8 * tb * 4
    vmem_limit = min(max(3 * (x_block_bytes + out_block_bytes), 16 << 20), 48 << 20)

    out = pl.pallas_call(
        functools.partial(_model_kernel, length=length),
        out_shape=jax.ShapeDtypeStruct((3, B), jnp.float32),
        grid=grid,
        in_specs=[
            pl.BlockSpec((tb, L), lambda i: (i, 0)),    # x: batch-tiled, pipelined
            pl.BlockSpec((3, L), lambda i: (0, 0)),     # weight: resident in VMEM
            pl.BlockSpec(memory_space=pltpu.MemorySpace.SMEM),  # bias scalars
        ],
        out_specs=pl.BlockSpec((3, tb), lambda i: (0, i)),      # single merged output
        compiler_params=pltpu.CompilerParams(
            dimension_semantics=("parallel",),
            vmem_limit_bytes=vmem_limit,
        ),
    )(x, w, b)

    # TODO(synk): torch.distributions.Normal itself has no Pallas/JAX
    # equivalent; we return its parameters (mean, std) instead.
    return (out[0], out[1]), out[2]


def _reference(x, w, b, length):
    y = x @ w.T + b
    mean = jax.nn.sigmoid(y[:, 0]) * length
    std = jnp.exp(y[:, 1])
    value = y[:, 2]
    return mean, std, value


def _check(B, LEN, key, **kwargs):
    kx, kw, kb = jax.random.split(key, 3)
    bound = 1.0 / math.sqrt(LEN)
    w = jax.random.uniform(kw, (3, LEN), jnp.float32, -bound, bound)  # torch layout
    b = jax.random.uniform(kb, (3,), jnp.float32, -bound, bound)
    x = jax.random.normal(kx, (B, LEN), jnp.float32)

    (mean, std), value = model_forward(x, w, b, LEN, **kwargs)
    jax.block_until_ready((mean, std, value))

    ref_mean, ref_std, ref_value = _reference(x, w, b, LEN)
    assert mean.shape == (B,) and std.shape == (B,) and value.shape == (B,)
    assert jnp.allclose(mean, ref_mean, atol=1e-5, rtol=1e-5)
    assert jnp.allclose(std, ref_std, atol=1e-5, rtol=1e-5)
    assert jnp.allclose(value, ref_value, atol=1e-5, rtol=1e-5)


if __name__ == "__main__":
    LEN = 32   # `len` argument of Model.__init__ (feature dimension)
    key = jax.random.PRNGKey(0)
    k1, k2, k3 = jax.random.split(key, 3)

    # Tiny batch: exercises the fused-jnp fast path.
    _check(B=8, LEN=LEN, key=k1)
    # Single-tile Pallas path.
    _check(B=256, LEN=LEN, key=k2, force_pallas=True)
    # Multi-step grid with a partial tail block (no host-side padding).
    _check(B=1000, LEN=LEN, key=k3, force_pallas=True, tb=512)

    print("KERNEL_OK")
</pallas_src>

<mosaic_0001>
module attributes {stable_mosaic.version = 11 : i64} {
  func.func @_model_kernel(%arg0: i32, %arg1: memref<256x32xf32, #tpu.memory_space<vmem>>, %arg2: memref<3x32xf32, #tpu.memory_space<vmem>>, %arg3: memref<3xf32, #tpu.memory_space<smem>>, %arg4: memref<3x256xf32, #tpu.memory_space<vmem>>) attributes {dimension_semantics = [#tpu.dimension_semantics<parallel>], iteration_bounds = array<i64: 1>, scalar_prefetch = 0 : i64, scratch_operands = 0 : i64, tpu.core_type = #tpu.core_type<tc>, window_params = [{transform_indices = @transform_0, window_bounds = array<i64: 256, 32>}, {pipeline_mode = #tpu.pipeline_mode<synchronous>, transform_indices = @transform_1, window_bounds = array<i64: 3, 32>}, {transform_indices = @transform_2, window_bounds = array<i64: 3>}, {transform_indices = @transform_3, window_bounds = array<i64: 3, 256>}]} {
    %c0 = arith.constant 0 : index
    %c0_0 = arith.constant 0 : index
    %0 = vector.load %arg2[%c0, %c0_0] : memref<3x32xf32, #tpu.memory_space<vmem>>, vector<3x32xf32>
    %c0_1 = arith.constant 0 : index
    %c0_2 = arith.constant 0 : index
    %1 = vector.load %arg1[%c0_1, %c0_2] : memref<256x32xf32, #tpu.memory_space<vmem>>, vector<256x32xf32>
    %cst = arith.constant dense<0.000000e+00> : vector<3x256xf32>
    %2 = tpu.matmul %0, %1, %cst {dimension_numbers = #tpu.dot_dimension_numbers<[1], [1], [0], [0], [0, 0, 1, 0], [], []>} : vector<3x32xf32>, vector<256x32xf32>, vector<3x256xf32> -> vector<3x256xf32>
    %3 = vector.extract_strided_slice %2 {offsets = [0, 0], sizes = [1, 256], strides = [1, 1]} : vector<3x256xf32> to vector<1x256xf32>
    %c0_3 = arith.constant 0 : index
    %4 = memref.load %arg3[%c0_3] : memref<3xf32, #tpu.memory_space<smem>>
    %5 = vector.broadcast %4 : f32 to vector<1x256xf32>
    %6 = arith.addf %3, %5 : vector<1x256xf32>
    %7 = arith.negf %6 : vector<1x256xf32>
    %8 = math.exp %7 : vector<1x256xf32>
    %cst_4 = arith.constant 1.000000e+00 : f32
    %9 = vector.broadcast %cst_4 : f32 to vector<1x256xf32>
    %10 = arith.addf %9, %8 : vector<1x256xf32>
    %11 = arith.divf %9, %10 : vector<1x256xf32>
    %cst_5 = arith.constant 3.200000e+01 : f32
    %12 = vector.broadcast %cst_5 : f32 to vector<1x256xf32>
    %13 = arith.mulf %11, %12 : vector<1x256xf32>
    %c0_6 = arith.constant 0 : index
    %c0_7 = arith.constant 0 : index
    %14 = vector.load %arg4[%c0_6, %c0_7] : memref<3x256xf32, #tpu.memory_space<vmem>>, vector<1x256xf32>
    tpu.vector_store %arg4[%c0_6, %c0_7], %13 {strides = array<i32>} : memref<3x256xf32, #tpu.memory_space<vmem>>, vector<1x256xf32>,
    %15 = vector.extract_strided_slice %2 {offsets = [1, 0], sizes = [1, 256], strides = [1, 1]} : vector<3x256xf32> to vector<1x256xf32>
    %c1 = arith.constant 1 : index
    %16 = memref.load %arg3[%c1] : memref<3xf32, #tpu.memory_space<smem>>
    %17 = vector.broadcast %16 : f32 to vector<1x256xf32>
    %18 = arith.addf %15, %17 : vector<1x256xf32>
    %19 = math.exp %18 : vector<1x256xf32>
    %c1_8 = arith.constant 1 : index
    %c0_9 = arith.constant 0 : index
    %20 = vector.load %arg4[%c1_8, %c0_9] : memref<3x256xf32, #tpu.memory_space<vmem>>, vector<1x256xf32>
    tpu.vector_store %arg4[%c1_8, %c0_9], %19 {strides = array<i32>} : memref<3x256xf32, #tpu.memory_space<vmem>>, vector<1x256xf32>,
    %21 = vector.extract_strided_slice %2 {offsets = [2, 0], sizes = [1, 256], strides = [1, 1]} : vector<3x256xf32> to vector<1x256xf32>
    %c2 = arith.constant 2 : index
    %22 = memref.load %arg3[%c2] : memref<3xf32, #tpu.memory_space<smem>>
    %23 = vector.broadcast %22 : f32 to vector<1x256xf32>
    %24 = arith.addf %21, %23 : vector<1x256xf32>
    %c2_10 = arith.constant 2 : index
    %c0_11 = arith.constant 0 : index
    %25 = vector.load %arg4[%c2_10, %c0_11] : memref<3x256xf32, #tpu.memory_space<vmem>>, vector<1x256xf32>
    tpu.vector_store %arg4[%c2_10, %c0_11], %24 {strides = array<i32>} : memref<3x256xf32, #tpu.memory_space<vmem>>, vector<1x256xf32>,
    return
  }
  func.func @transform_0(%arg0: i32) -> (i32, i32) {
    %c0_i32 = arith.constant 0 : i32
    %c0_i32_0 = arith.constant 0 : i32
    return %arg0, %c0_i32 : i32, i32
  }
  func.func @transform_1(%arg0: i32) -> (i32, i32) {
    %c0_i32 = arith.constant 0 : i32
    %c0_i32_0 = arith.constant 0 : i32
    %c0_i32_1 = arith.constant 0 : i32
    return %c0_i32, %c0_i32_0 : i32, i32
  }
  func.func @transform_2(%arg0: i32) -> i32 {
    %c0_i32 = arith.constant 0 : i32
    %c0_i32_0 = arith.constant 0 : i32
    return %c0_i32 : i32
  }
  func.func @transform_3(%arg0: i32) -> (i32, i32) {
    %c0_i32 = arith.constant 0 : i32
    %c0_i32_0 = arith.constant 0 : i32
    return %c0_i32, %arg0 : i32, i32
  }
}

</mosaic_0001>

<llo_original>
// kernel: tpu_custom_call.1
$region0: #{tpu_custom_call.1}
  #allocation0 [shape = 'u32[]', space=smem, size = 0x4, offset = 0x4, fixed_abs, tag = 'smem constant byte address 0x4 - core index']
  #allocation1 [shape = 'u32[144,128]{1,0:T(1,128)}', space=vmem, size = 0x12000, scoped, tag = 'internal scratch']
  %s0 = inlined_call_operand.vmem [shape: f32[256,32], index: 0, kind: input, shape index: {}]
  %s1 = inlined_call_operand.vmem [shape: f32[3,32], index: 1, kind: input, shape index: {}]
  %s2 = inlined_call_operand.vmem [shape: f32[3], index: 2, kind: input, shape index: {}]
  %s3 = inlined_call_operand.hbm [shape: f32[3,256], index: 3, kind: output, shape index: {}]
  %s4 = sld [smem:[#allocation0]]
  $region26: #{tpu_custom_call.1} parent=0
    _
  %s6 = ssub.s32 1, %s4
  %s7 = scalar_select 0, %s6, %s4
  $region1: #{tpu_custom_call.1} parent=0
    #allocation2 [shape = 'u8[512]{0}', space=smem, size = 0x200, scoped, tag = 'input window, operand 2, single buffered']
    #allocation3 [shape = 's32[1]{0}', space=sflag, size = 0x4, scoped, tag = 'scoped memory for tpu_custom_call.1']
    #allocation4 [shape = 's32[1]{0}', space=sflag, size = 0x4, scoped, tag = 'scoped memory for tpu_custom_call.1']
    #allocation5 [shape = 'u8[4096]{0}', space=vmem, size = 0x1000, scoped, tag = 'output window, operand 0, single buffered']
    %8 = vsyncpa [#allocation4], 0
    %9 = vsyncpa [#allocation3], 0
    // Predicated region
    $region2: #{tpu_custom_call.1} parent=1 // pred_check
      _
    $region3: #{tpu_custom_call.1} parent=1 // pred_check_branch
      %11 = sbr.rel (0) target = $region5
    $region4: #{tpu_custom_call.1} parent=1 // pred_region
      _
    $region5: #{tpu_custom_call.1} parent=1 // pred_fallthru
      _
    // Predicated region
    $region6: #{tpu_custom_call.1} parent=1 // pred_check
      _
    $region7: #{tpu_custom_call.1} parent=1 // pred_check_branch
      %13 = sbr.rel (0) target = $region9
    $region8: #{tpu_custom_call.1} parent=1 // pred_region
      _
    $region9: #{tpu_custom_call.1} parent=1 // pred_fallthru
      _
    // Predicated region
    $region10: #{tpu_custom_call.1} parent=1 // pred_check
      _
    $region11: #{tpu_custom_call.1} parent=1 // pred_check_branch
      %15 = sbr.rel (0) target = $region13
    $region12: #{tpu_custom_call.1} parent=1 // pred_region
      %s17 = ssub.s32 16, 16
      %18 = vsyncadd [#allocation4], %s17
      %s20 = sshll.u32 %s2, 4
      %s21 = int_to_ptr.vmem [resolvable:$true] %s20
      %23 = dma.vmem_to_smem %s21, 16, [#allocation2], [#allocation4]
    $region13: #{tpu_custom_call.1} parent=1 // pred_fallthru
      _
    // Predicated region
    $region14: #{tpu_custom_call.1} parent=1 // pred_check
      _
    $region15: #{tpu_custom_call.1} parent=1 // pred_check_branch
      %25 = sbr.rel (0) target = $region17
    $region16: #{tpu_custom_call.1} parent=1 // pred_region
      %26 = dma.done [#allocation4], 16
    $region17: #{tpu_custom_call.1} parent=1 // pred_fallthru
      _
    %27 = sfence
    %v28 = vld [vmem:[%s1] sm:$0x7]
    %v29 = vld [vmem:[%s0] sm:$0xff]
    %v30 = vld [vmem:[%s0 + $0x8] sm:$0xff]
    %v31 = vld [vmem:[%s0 + $0x10] sm:$0xff]
    %v32 = vld [vmem:[%s0 + $0x18] sm:$0xff]
    %v33 = vld [vmem:[%s0 + $0x20] sm:$0xff]
    %v34 = vld [vmem:[%s0 + $0x28] sm:$0xff]
    %v35 = vld [vmem:[%s0 + $0x30] sm:$0xff]
    %v36 = vld [vmem:[%s0 + $0x38] sm:$0xff]
    %v37 = vld [vmem:[%s0 + $0x40] sm:$0xff]
    %v38 = vld [vmem:[%s0 + $0x48] sm:$0xff]
    %v39 = vld [vmem:[%s0 + $0x50] sm:$0xff]
    %v40 = vld [vmem:[%s0 + $0x58] sm:$0xff]
    %v41 = vld [vmem:[%s0 + $0x60] sm:$0xff]
    %v42 = vld [vmem:[%s0 + $0x68] sm:$0xff]
    %v43 = vld [vmem:[%s0 + $0x70] sm:$0xff]
    %v44 = vld [vmem:[%s0 + $0x78] sm:$0xff]
    %v45 = vld [vmem:[%s0 + $0x80] sm:$0xff]
    %v46 = vld [vmem:[%s0 + $0x88] sm:$0xff]
    %v47 = vld [vmem:[%s0 + $0x90] sm:$0xff]
    %v48 = vld [vmem:[%s0 + $0x98] sm:$0xff]
    %v49 = vld [vmem:[%s0 + $0xa0] sm:$0xff]
    %v50 = vld [vmem:[%s0 + $0xa8] sm:$0xff]
    %v51 = vld [vmem:[%s0 + $0xb0] sm:$0xff]
    %v52 = vld [vmem:[%s0 + $0xb8] sm:$0xff]
    %v53 = vld [vmem:[%s0 + $0xc0] sm:$0xff]
    %v54 = vld [vmem:[%s0 + $0xc8] sm:$0xff]
    %v55 = vld [vmem:[%s0 + $0xd0] sm:$0xff]
    %v56 = vld [vmem:[%s0 + $0xd8] sm:$0xff]
    %v57 = vld [vmem:[%s0 + $0xe0] sm:$0xff]
    %v58 = vld [vmem:[%s0 + $0xe8] sm:$0xff]
    %v59 = vld [vmem:[%s0 + $0xf0] sm:$0xff]
    %v60 = vld [vmem:[%s0 + $0xf8] sm:$0xff]
    %vm61 = vcmask 261120
    %v63 = vsel %vm61, %v28, 0
    %v66 = vsel %vm61, %v29, 0
    %v69 = vsel %vm61, %v30, 0
    %v72 = vsel %vm61, %v31, 0
    %v75 = vsel %vm61, %v32, 0
    %v78 = vsel %vm61, %v33, 0
    %v81 = vsel %vm61, %v34, 0
    %v84 = vsel %vm61, %v35, 0
    %v87 = vsel %vm61, %v36, 0
    %v90 = vsel %vm61, %v37, 0
    %v93 = vsel %vm61, %v38, 0
    %v96 = vsel %vm61, %v39, 0
    %v99 = vsel %vm61, %v40, 0
    %v102 = vsel %vm61, %v41, 0
    %v105 = vsel %vm61, %v42, 0
    %v108 = vsel %vm61, %v43, 0
    %v111 = vsel %vm61, %v44, 0
    %v114 = vsel %vm61, %v45, 0
    %v117 = vsel %vm61, %v46, 0
    %v120 = vsel %vm61, %v47, 0
    %v123 = vsel %vm61, %v48, 0
    %v126 = vsel %vm61, %v49, 0
    %v129 = vsel %vm61, %v50, 0
    %v132 = vsel %vm61, %v51, 0
    %v135 = vsel %vm61, %v52, 0
    %v138 = vsel %vm61, %v53, 0
    %v141 = vsel %vm61, %v54, 0
    %v144 = vsel %vm61, %v55, 0
    %v147 = vsel %vm61, %v56, 0
    %v150 = vsel %vm61, %v57, 0
    %v153 = vsel %vm61, %v58, 0
    %v156 = vsel %vm61, %v59, 0
    %v159 = vsel %vm61, %v60, 0
    %161 = vmatprep.subr.mxu0 0.0
    %162 = vmatpush1.xpose.msra.mxu0 %v66
    %163 = vmatprep.subr.mxu0 0.0
    %164 = vmatpush1.xpose.msra.mxu0 %v69
    %165 = vmatprep.subr.mxu0 0.0
    %166 = vmatpush1.xpose.msra.mxu0 %v72
    %167 = vmatprep.subr.mxu0 0.0
    %168 = vmatpush1.xpose.msra.mxu0 %v75
    %169 = vmatprep.subr.mxu0 0.0
    %170 = vmatpush1.xpose.msra.mxu0 %v78
    %171 = vmatprep.subr.mxu0 0.0
    %172 = vmatpush1.xpose.msra.mxu0 %v81
    %173 = vmatprep.subr.mxu0 0.0
    %174 = vmatpush1.xpose.msra.mxu0 %v84
    %175 = vmatprep.subr.mxu0 0.0
    %176 = vmatpush1.xpose.msra.mxu0 %v87
    %177 = vmatprep.subr.mxu0 0.0
    %178 = vmatpush1.xpose.msra.mxu0 %v90
    %179 = vmatprep.subr.mxu0 0.0
    %180 = vmatpush1.xpose.msra.mxu0 %v93
    %181 = vmatprep.subr.mxu0 0.0
    %182 = vmatpush1.xpose.msra.mxu0 %v96
    %183 = vmatprep.subr.mxu0 0.0
    %184 = vmatpush1.xpose.msra.mxu0 %v99
    %185 = vmatprep.subr.mxu0 0.0
    %186 = vmatpush1.xpose.msra.mxu0 %v102
    %187 = vmatprep.subr.mxu0 0.0
    %188 = vmatpush1.xpose.msra.mxu0 %v105
    %189 = vmatprep.subr.mxu0 0.0
    %190 = vmatpush1.xpose.msra.mxu0 %v108
    %191 = vmatprep.subr.mxu0 0.0
    %192 = vmatpush1.xpose.msra.mxu0 %v111
    %193 = vmatprep.subr.mxu0 0.0
    %194 = vmatpush1.xpose.msra.mxu0 %v114
    %195 = vmatprep.subr.mxu0 0.0
    %196 = vmatpush1.xpose.msra.mxu0 %v117
    %197 = vmatprep.subr.mxu0 0.0
    %198 = vmatpush1.xpose.msra.mxu0 %v120
    %199 = vmatprep.subr.mxu0 0.0
    %200 = vmatpush1.xpose.msra.mxu0 %v123
    %201 = vmatprep.subr.mxu0 0.0
    %202 = vmatpush1.xpose.msra.mxu0 %v126
    %203 = vmatprep.subr.mxu0 0.0
    %204 = vmatpush1.xpose.msra.mxu0 %v129
    %205 = vmatprep.subr.mxu0 0.0
    %206 = vmatpush1.xpose.msra.mxu0 %v132
    %207 = vmatprep.subr.mxu0 0.0
    %208 = vmatpush1.xpose.msra.mxu0 %v135
    %209 = vmatprep.subr.mxu0 0.0
    %210 = vmatpush1.xpose.msra.mxu0 %v138
    %211 = vmatprep.subr.mxu0 0.0
    %212 = vmatpush1.xpose.msra.mxu0 %v141
    %213 = vmatprep.subr.mxu0 0.0
    %214 = vmatpush1.xpose.msra.mxu0 %v144
    %215 = vmatprep.subr.mxu0 0.0
    %216 = vmatpush1.xpose.msra.mxu0 %v147
    %217 = vmatprep.subr.mxu0 0.0
    %218 = vmatpush1.xpose.msra.mxu0 %v150
    %219 = vmatprep.subr.mxu0 0.0
    %220 = vmatpush1.xpose.msra.mxu0 %v153
    %221 = vmatprep.subr.mxu0 0.0
    %222 = vmatpush1.xpose.msra.mxu0 %v156
    %223 = vmatprep.subr.mxu0 0.0
    %224 = vmatpush1.xpose.msra.mxu0 %v159
    %225 = vmatprep.mubr.f32.mxu0 0.0
    %226 = vmatmul.mubr.f32.gmra.mrb[0].mxu0 %v63
    %v227 = vpop.f32.mrb[0].mxu0
    %v228 = vadd.f32 0.0, %v227
    %v229 = vpop.f32.mrb[0].mxu0
    %v230 = vadd.f32 0.0, %v229
    %231 = vdwg.mxu0
    %s232 = sld [smem:[#allocation2]]
    %v233 = vstv %s232
    %v234 = vadd.f32 %v228, %v233
    %v235 = vadd.f32 %v230, %v233
    %v236 = vxor.u32 %v234, 2147483648
    %v237 = vxor.u32 %v235, 2147483648
    %v238 = vmul.f32 %v236, 1.442695
    %v239 = vpow.pop %v238
    %v240 = vmul.f32 %v237, 1.442695
    %v241 = vpow.pop %v240
    %v242 = vadd.f32 %v239, 1.0
    %v243 = vadd.f32 %v241, 1.0
    %v244 = vrcp.pop %v242
    %v245 = vmul.f32 1.0, %v244
    %v246 = vrcp.pop %v243
    %v247 = vmul.f32 1.0, %v246
    %v248 = vmul.f32 %v245, 32.0
    %v249 = vmul.f32 %v247, 32.0
    %v252 = vcombine.low %v248, %v249
    %v254 = vunpack.c.l.s4 1966171168
    %v255 = vunpack.c.0.s8 %v254
    %v256 = vlaneseq
    %v257 = vshrl.u32 %v256, 7
    %v258 = vsub.s32 %v255, %v257
    %v259 = vrot.slane %v252, %v258
    %v261 = vunpack.c.l.s4 1966171168
    %v262 = vunpack.c.0.s8 %v261
    %v263 = vlaneseq
    %v264 = vshrl.u32 %v263, 7
    %v265 = vsub.s32 %v262, %v264
    %v266 = vrot.slane %v259, %v265
    %v268 = vlaneseq
    %vm269 = vcmp.ge.s32.totalorder %v268, 0
    %vm270 = vcmp.lt.s32.totalorder %v268, 256
    %vm271 = vmand %vm269, %vm270
    %272 = vst.msk [vmem:[#allocation5] ss:$4 sm:$0x3] %vm271, %v266
    %s273 = sld [smem:[#allocation2 + $0x1]]
    %v274 = vstv %s273
    %v275 = vadd.f32 %v228, %v274
    %v276 = vadd.f32 %v230, %v274
    %v277 = vmul.f32 %v275, 1.442695
    %v278 = vpow.pop %v277
    %v279 = vmul.f32 %v276, 1.442695
    %v280 = vpow.pop %v279
    %v283 = vcombine.low %v278, %v280
    %v285 = vunpack.c.l.s4 1966171168
    %v286 = vunpack.c.0.s8 %v285
    %v287 = vlaneseq
    %v288 = vshrl.u32 %v287, 7
    %v289 = vsub.s32 %v286, %v288
    %v290 = vrot.slane %v283, %v289
    %v291 = vcombine.high %v290, %v290
    %v293 = vunpack.c.l.s4 1966171168
    %v294 = vunpack.c.0.s8 %v293
    %v295 = vlaneseq
    %v296 = vshrl.u32 %v295, 7
    %v297 = vsub.s32 %v294, %v296
    %v298 = vrot.slane %v291, %v297
    %s300 = scalar_lea.vmem [#allocation5], 1
    %301 = vst.msk [vmem:[%s300] ss:$4 sm:$0x3] %vm271, %v298
    %s302 = sld [smem:[#allocation2 + $0x2]]
    %v303 = vstv %s302
    %v304 = vadd.f32 %v228, %v303
    %v305 = vadd.f32 %v230, %v303
    %v308 = vcombine.low %v304, %v305
    %v310 = vunpack.c.l.s4 1966171168
    %v311 = vunpack.c.0.s8 %v310
    %v312 = vlaneseq
    %v313 = vshrl.u32 %v312, 7
    %v314 = vsub.s32 %v311, %v313
    %v315 = vrot.slane %v308, %v314
    %v317 = vunpack.c.l.s4 1966171168
    %v318 = vunpack.c.0.s8 %v317
    %v319 = vlaneseq
    %v320 = vshrl.u32 %v319, 7
    %v321 = vsub.s32 %v318, %v320
    %v322 = vrot.slane %v315, %v321
    %v323 = vcombine.high %v322, %v322
    %s325 = scalar_lea.vmem [#allocation5], 2
    %326 = vst.msk [vmem:[%s325] ss:$4 sm:$0x3] %vm271, %v323
    // Predicated region
    $region18: #{tpu_custom_call.1} parent=1 // pred_check
      _
    $region19: #{tpu_custom_call.1} parent=1 // pred_check_branch
      %328 = sbr.rel (0) target = $region21
    $region20: #{tpu_custom_call.1} parent=1 // pred_region
      %s330 = ssub.s32 128, 128
      %331 = vsyncadd [#allocation3], %s330
      %s333 = sshll.u32 [#allocation5], 4
      %s334 = int_to_ptr.vmem [resolvable:$true] %s333
      %336 = dma.vmem_to_hbm [thread:$0]  %s334, 128, %s3, [#allocation3]
    $region21: #{tpu_custom_call.1} parent=1 // pred_fallthru
      _
    // Predicated region
    $region22: #{tpu_custom_call.1} parent=1 // pred_check
      _
    $region23: #{tpu_custom_call.1} parent=1 // pred_check_branch
      %338 = sbr.rel (0) target = $region25
    $region24: #{tpu_custom_call.1} parent=1 // pred_region
      %339 = dma.done [#allocation3], 128
    $region25: #{tpu_custom_call.1} parent=1 // pred_fallthru
      _
    %340 = vsyncpa [#allocation3], 1
    %341 = vsyncpa [#allocation4], 1

</llo_original>
